<compile_context>
chip_gen: v7x
topology: tpu7x:2x2x1
jax: 0.10.0
libtpu: 0.0.40
codegen_flags: <defaults>
</compile_context>

<pallas_src>
import functools

import jax
import jax.numpy as jnp
from jax import lax
from jax.experimental import pallas as pl
from jax.experimental.pallas import tpu as pltpu

_LANE = 128
_TARGET_BLOCK_BYTES = 2 * 1024 * 1024   # ~2 MiB f32 working set per slab


def _pick_batch_block(B, per_row_bytes):
    """Largest divisor of B whose slab fits the target, preferring >=2 grid steps."""
    divisors = [d for d in range(1, B + 1) if B % d == 0]
    fits = [d for d in divisors if d * per_row_bytes <= _TARGET_BLOCK_BYTES] or [1]
    multi = [d for d in fits if B // d >= 2]   # keep both v7x TensorCores busy
    return max(multi) if multi else max(fits)


def _plan(B, T, C):
    """Layout / blocking plan. time_last=True puts T on lanes (lane-dense for small C)."""
    time_last = C < _LANE
    Bb = _pick_batch_block(B, T * C * 4)       # size against the f32 working set
    if time_last:
        return dict(time_last=True, Bb=Bb, time_axis=2,
                    data_blk=(Bb, C, T), stat_blk=(Bb, C, 1),
                    stat_shape=(B, C, 1), wb_shape=(C, 1))
    return dict(time_last=False, Bb=Bb, time_axis=1,
                data_blk=(Bb, T, C), stat_blk=(Bb, 1, C),
                stat_shape=(B, 1, C), wb_shape=(1, C))


def _compiler_params():
    return pltpu.CompilerParams(
        dimension_semantics=("parallel",),
        vmem_limit_bytes=32 * 1024 * 1024)


# --------------------------------------------------------------------- kernels
def _revin_norm_kernel(x_ref, w_ref, b_ref, y_ref, loc_ref, std_ref,
                       *, eps, affine, subtract_last, time_axis):
    x = x_ref[...].astype(jnp.float32)                    # (Bb,C,T) or (Bb,T,C)
    mean = jnp.mean(x, axis=time_axis, keepdims=True)
    # unbiased=False variance (divide by T), matches torch.var(..., unbiased=False)
    var = jnp.mean(jnp.square(x - mean), axis=time_axis, keepdims=True)
    inv_std = lax.rsqrt(var + eps)                        # EUP; drives the hot path
    std = jnp.sqrt(var + eps)                             # exact stdev emitted
    if subtract_last:
        # NOTE: matches torch RevIN: loc is the last timestep, but stdev is
        # still the mean-based variance. Intentional, do not "fix".
        t = x.shape[time_axis]
        loc = lax.slice_in_dim(x, t - 1, t, axis=time_axis)
    else:
        loc = mean
    if affine:
        w = w_ref[...][None]                              # (1,C,1) / (1,1,C)
        b = b_ref[...][None]
        scale = inv_std * w                               # per-channel
        shift = b - loc * scale
    else:
        scale = inv_std
        shift = -loc * scale
    y_ref[...] = (x * scale + shift).astype(y_ref.dtype)  # single mul-add sweep
    loc_ref[...] = loc.astype(loc_ref.dtype)
    std_ref[...] = std.astype(std_ref.dtype)


def _revin_denorm_kernel(x_ref, loc_ref, std_ref, w_ref, b_ref, y_ref,
                         *, eps, affine):
    x = x_ref[...].astype(jnp.float32)
    loc = loc_ref[...].astype(jnp.float32)
    std = std_ref[...].astype(jnp.float32)
    if affine:
        w = w_ref[...][None]
        b = b_ref[...][None]
        # divide by (w + eps^2) only over the per-channel slice (matches torch,
        # including the blow-up for w ~ -eps^2).
        scale = std / (w + eps * eps)
        shift = loc - b * scale
    else:
        scale = std
        shift = loc
    y_ref[...] = (x * scale + shift).astype(y_ref.dtype)  # single mul-add sweep


# --------------------------------------------------------------------- wrapper
class RevIN:
    """JAX/Pallas port of the PyTorch RevIN module (forward only).

    Note: like the torch module, statistics are stored on the instance
    (side-effectful); this mirrors the reference API but is not jit-pure.
    """

    def __init__(self, num_features: int, eps=1e-5, affine=True, subtract_last=False):
        self.num_features = num_features
        self.eps = float(eps)
        self.affine = affine
        self.subtract_last = subtract_last
        # Deterministic init, same as nn.Parameter(torch.ones/zeros(num_features)).
        self.affine_weight = jnp.ones((num_features,), jnp.float32)
        self.affine_bias = jnp.zeros((num_features,), jnp.float32)
        # statistics: canonical (B, 1, C) views (torch layout) + internal copies
        self.loc = None
        self.stdev = None
        self._loc_int = None
        self._std_int = None
        self._time_last = None

    def __call__(self, x, mode: str):
        if mode == "norm":
            return self._norm(x)
        if mode == "denorm":
            return self._denorm(x)
        raise NotImplementedError(mode)

    # ---------------------------------------------------------------- norm
    def _norm(self, x):
        B, T, C = x.shape
        p = _plan(B, T, C)
        # layout plumbing only: present a lane-dense slab to the kernel
        x_int = jnp.transpose(x, (0, 2, 1)) if p["time_last"] else x
        w2 = self.affine_weight.reshape(p["wb_shape"])
        b2 = self.affine_bias.reshape(p["wb_shape"])

        kernel = functools.partial(
            _revin_norm_kernel, eps=self.eps, affine=self.affine,
            subtract_last=self.subtract_last, time_axis=p["time_axis"])
        grid_spec = pltpu.PrefetchScalarGridSpec(
            num_scalar_prefetch=0,
            grid=(B // p["Bb"],),
            in_specs=[
                pl.BlockSpec(p["data_blk"], lambda i: (i, 0, 0)),   # x
                pl.BlockSpec(p["wb_shape"], lambda i: (0, 0)),      # weight
                pl.BlockSpec(p["wb_shape"], lambda i: (0, 0)),      # bias
            ],
            out_specs=[
                pl.BlockSpec(p["data_blk"], lambda i: (i, 0, 0)),   # y
                pl.BlockSpec(p["stat_blk"], lambda i: (i, 0, 0)),   # loc
                pl.BlockSpec(p["stat_blk"], lambda i: (i, 0, 0)),   # stdev
            ],
        )
        y_int, loc_int, std_int = pl.pallas_call(
            kernel,
            out_shape=(jax.ShapeDtypeStruct(x_int.shape, x.dtype),
                       jax.ShapeDtypeStruct(p["stat_shape"], jnp.float32),
                       jax.ShapeDtypeStruct(p["stat_shape"], jnp.float32)),
            grid_spec=grid_spec,
            compiler_params=_compiler_params(),
        )(x_int, w2, b2)

        self._time_last = p["time_last"]
        self._loc_int, self._std_int = loc_int, std_int
        if p["time_last"]:
            self.loc = jnp.transpose(loc_int, (0, 2, 1))      # (B,1,C), torch layout
            self.stdev = jnp.transpose(std_int, (0, 2, 1))
            return jnp.transpose(y_int, (0, 2, 1))
        self.loc, self.stdev = loc_int, std_int
        return y_int

    # -------------------------------------------------------------- denorm
    def _denorm(self, x):
        assert self._loc_int is not None and self._std_int is not None, \
            "must call forward(x, 'norm') before 'denorm'"
        B, T, C = x.shape
        p = _plan(B, T, C)
        x_int = jnp.transpose(x, (0, 2, 1)) if p["time_last"] else x
        w2 = self.affine_weight.reshape(p["wb_shape"])
        b2 = self.affine_bias.reshape(p["wb_shape"])

        kernel = functools.partial(
            _revin_denorm_kernel, eps=self.eps, affine=self.affine)
        grid_spec = pltpu.PrefetchScalarGridSpec(
            num_scalar_prefetch=0,
            grid=(B // p["Bb"],),
            in_specs=[
                pl.BlockSpec(p["data_blk"], lambda i: (i, 0, 0)),   # x
                pl.BlockSpec(p["stat_blk"], lambda i: (i, 0, 0)),   # loc
                pl.BlockSpec(p["stat_blk"], lambda i: (i, 0, 0)),   # stdev
                pl.BlockSpec(p["wb_shape"], lambda i: (0, 0)),      # weight
                pl.BlockSpec(p["wb_shape"], lambda i: (0, 0)),      # bias
            ],
            out_specs=pl.BlockSpec(p["data_blk"], lambda i: (i, 0, 0)),
        )
        y_int = pl.pallas_call(
            kernel,
            out_shape=jax.ShapeDtypeStruct(x_int.shape, x.dtype),
            grid_spec=grid_spec,
            compiler_params=_compiler_params(),
            # when time_last, x_int is a fresh internal copy -> safe to reuse its
            # HBM buffer for the output (cuts peak footprint, same block indices)
            input_output_aliases=({0: 0} if p["time_last"] else {}),
        )(x_int, self._loc_int, self._std_int, w2, b2)
        return jnp.transpose(y_int, (0, 2, 1)) if p["time_last"] else y_int


# ------------------------------------------------------------ pure-JAX reference
def _ref_norm(x, w, b, eps, affine=True, subtract_last=False):
    mean = jnp.mean(x, axis=1, keepdims=True)
    var = jnp.mean((x - mean) ** 2, axis=1, keepdims=True)
    std = jnp.sqrt(var + eps)
    loc = x[:, -1:, :] if subtract_last else mean
    y = (x - loc) / std
    if affine:
        y = y * w.reshape(1, 1, -1) + b.reshape(1, 1, -1)
    return y, loc, std


def _ref_denorm(y, loc, std, w, b, eps, affine=True):
    x = y
    if affine:
        x = x - b.reshape(1, 1, -1)
        x = x / (w.reshape(1, 1, -1) + eps * eps)
    x = x * std
    x = x + loc
    return x


if __name__ == "__main__":
    key = jax.random.PRNGKey(0)

    # ---- case 1: typical small time-series shape (C < 128 -> lane-dense (B,C,T) path)
    B, T, C = 4, 96, 7
    x = jax.random.normal(key, (B, T, C), dtype=jnp.float32) * 3.0 + 1.5

    revin = RevIN(num_features=C, eps=1e-5, affine=True, subtract_last=False)
    y = jax.block_until_ready(revin(x, "norm"))
    x_rec = jax.block_until_ready(revin(y, "denorm"))

    y_ref, loc_ref, std_ref = _ref_norm(x, revin.affine_weight, revin.affine_bias,
                                        revin.eps)
    x_rec_ref = _ref_denorm(y_ref, loc_ref, std_ref, revin.affine_weight,
                            revin.affine_bias, revin.eps)
    assert jnp.allclose(y, y_ref, atol=1e-4, rtol=1e-4), "norm mismatch"
    assert jnp.allclose(revin.loc, loc_ref, atol=1e-4, rtol=1e-4), "mean mismatch"
    assert jnp.allclose(revin.stdev, std_ref, atol=1e-4, rtol=1e-4), "stdev mismatch"
    assert jnp.allclose(x_rec, x_rec_ref, atol=1e-4, rtol=1e-4), "denorm mismatch"
    assert jnp.allclose(x_rec, x, atol=1e-3, rtol=1e-3), "roundtrip mismatch"

    # ---- case 2: subtract_last=True, affine=False (other kernel branches)
    revin_sl = RevIN(num_features=C, eps=1e-5, affine=False, subtract_last=True)
    y2 = jax.block_until_ready(revin_sl(x, "norm"))
    x2 = jax.block_until_ready(revin_sl(y2, "denorm"))
    y2_ref, _, _ = _ref_norm(x, revin_sl.affine_weight, revin_sl.affine_bias,
                             revin_sl.eps, affine=False, subtract_last=True)
    assert jnp.allclose(y2, y2_ref, atol=1e-4, rtol=1e-4), "subtract_last norm mismatch"
    assert jnp.allclose(x2, x, atol=1e-3, rtol=1e-3), "subtract_last roundtrip mismatch"

    # ---- case 3: wide-feature shape (C >= 128 -> native (B,T,C) lane-dense path)
    B3, T3, C3 = 2, 16, 128
    x3 = jax.random.normal(jax.random.PRNGKey(1), (B3, T3, C3), jnp.float32) + 0.5
    revin_w = RevIN(num_features=C3, eps=1e-5, affine=True, subtract_last=False)
    y3 = jax.block_until_ready(revin_w(x3, "norm"))
    x3_rec = jax.block_until_ready(revin_w(y3, "denorm"))
    y3_ref, _, _ = _ref_norm(x3, revin_w.affine_weight, revin_w.affine_bias,
                             revin_w.eps)
    assert jnp.allclose(y3, y3_ref, atol=1e-4, rtol=1e-4), "wide norm mismatch"
    assert jnp.allclose(x3_rec, x3, atol=1e-3, rtol=1e-3), "wide roundtrip mismatch"

    print("KERNEL_OK")
</pallas_src>

<mosaic_0001>
module attributes {stable_mosaic.version = 11 : i64} {
  func.func @_revin_norm_kernel(%arg0: i32, %arg1: memref<2x7x96xf32, #tpu.memory_space<vmem>>, %arg2: memref<7x1xf32, #tpu.memory_space<vmem>>, %arg3: memref<7x1xf32, #tpu.memory_space<vmem>>, %arg4: memref<2x7x96xf32, #tpu.memory_space<vmem>>, %arg5: memref<2x7x1xf32, #tpu.memory_space<vmem>>, %arg6: memref<2x7x1xf32, #tpu.memory_space<vmem>>) attributes {dimension_semantics = [#tpu.dimension_semantics<parallel>], iteration_bounds = array<i64: 2>, scalar_prefetch = 0 : i64, scratch_operands = 0 : i64, tpu.core_type = #tpu.core_type<tc>, window_params = [{transform_indices = @transform_0, window_bounds = array<i64: 2, 7, 96>}, {pipeline_mode = #tpu.pipeline_mode<synchronous>, transform_indices = @transform_1, window_bounds = array<i64: 7, 1>}, {pipeline_mode = #tpu.pipeline_mode<synchronous>, transform_indices = @transform_2, window_bounds = array<i64: 7, 1>}, {transform_indices = @transform_3, window_bounds = array<i64: 2, 7, 96>}, {transform_indices = @transform_4, window_bounds = array<i64: 2, 7, 1>}, {transform_indices = @transform_5, window_bounds = array<i64: 2, 7, 1>}]} {
    %c0 = arith.constant 0 : index
    %c0_0 = arith.constant 0 : index
    %c0_1 = arith.constant 0 : index
    %0 = vector.load %arg1[%c0, %c0_0, %c0_1] : memref<2x7x96xf32, #tpu.memory_space<vmem>>, vector<2x7x96xf32>
    %cst = arith.constant dense<0.000000e+00> : vector<2x7xf32>
    %1 = vector.multi_reduction <add>, %0, %cst [2] : vector<2x7x96xf32> to vector<2x7xf32>
    %2 = vector.shape_cast %1 : vector<2x7xf32> to vector<2x7x1xf32>
    %cst_2 = arith.constant 9.600000e+01 : f32
    %3 = vector.broadcast %cst_2 : f32 to vector<2x7x1xf32>
    %4 = arith.divf %2, %3 : vector<2x7x1xf32>
    %5 = vector.broadcast %4 : vector<2x7x1xf32> to vector<2x7x96xf32>
    %6 = arith.subf %0, %5 : vector<2x7x96xf32>
    %7 = arith.mulf %6, %6 : vector<2x7x96xf32>
    %cst_3 = arith.constant dense<0.000000e+00> : vector<2x7xf32>
    %8 = vector.multi_reduction <add>, %7, %cst_3 [2] : vector<2x7x96xf32> to vector<2x7xf32>
    %9 = vector.shape_cast %8 : vector<2x7xf32> to vector<2x7x1xf32>
    %cst_4 = arith.constant 9.600000e+01 : f32
    %10 = vector.broadcast %cst_4 : f32 to vector<2x7x1xf32>
    %11 = arith.divf %9, %10 : vector<2x7x1xf32>
    %cst_5 = arith.constant 9.99999974E-6 : f32
    %12 = vector.broadcast %cst_5 : f32 to vector<2x7x1xf32>
    %13 = arith.addf %11, %12 : vector<2x7x1xf32>
    %14 = math.rsqrt %13 : vector<2x7x1xf32>
    %cst_6 = arith.constant 9.99999974E-6 : f32
    %15 = vector.broadcast %cst_6 : f32 to vector<2x7x1xf32>
    %16 = arith.addf %11, %15 : vector<2x7x1xf32>
    %17 = math.sqrt %16 : vector<2x7x1xf32>
    %c0_7 = arith.constant 0 : index
    %c0_8 = arith.constant 0 : index
    %18 = vector.load %arg2[%c0_7, %c0_8] : memref<7x1xf32, #tpu.memory_space<vmem>>, vector<7x1xf32>
    %19 = vector.shape_cast %18 : vector<7x1xf32> to vector<1x7x1xf32>
    %c0_9 = arith.constant 0 : index
    %c0_10 = arith.constant 0 : index
    %20 = vector.load %arg3[%c0_9, %c0_10] : memref<7x1xf32, #tpu.memory_space<vmem>>, vector<7x1xf32>
    %21 = vector.shape_cast %20 : vector<7x1xf32> to vector<1x7x1xf32>
    %22 = vector.broadcast %19 : vector<1x7x1xf32> to vector<2x7x1xf32>
    %23 = arith.mulf %14, %22 : vector<2x7x1xf32>
    %24 = arith.mulf %4, %23 : vector<2x7x1xf32>
    %25 = vector.broadcast %21 : vector<1x7x1xf32> to vector<2x7x1xf32>
    %26 = arith.subf %25, %24 : vector<2x7x1xf32>
    %27 = vector.broadcast %23 : vector<2x7x1xf32> to vector<2x7x96xf32>
    %28 = arith.mulf %0, %27 : vector<2x7x96xf32>
    %29 = vector.broadcast %26 : vector<2x7x1xf32> to vector<2x7x96xf32>
    %30 = arith.addf %28, %29 : vector<2x7x96xf32>
    %c0_11 = arith.constant 0 : index
    %c0_12 = arith.constant 0 : index
    %c0_13 = arith.constant 0 : index
    %31 = vector.load %arg4[%c0_11, %c0_12, %c0_13] : memref<2x7x96xf32, #tpu.memory_space<vmem>>, vector<2x7x96xf32>
    tpu.vector_store %arg4[%c0_11, %c0_12, %c0_13], %30 {strides = array<i32>} : memref<2x7x96xf32, #tpu.memory_space<vmem>>, vector<2x7x96xf32>,
    %c0_14 = arith.constant 0 : index
    %c0_15 = arith.constant 0 : index
    %c0_16 = arith.constant 0 : index
    %32 = vector.load %arg5[%c0_14, %c0_15, %c0_16] : memref<2x7x1xf32, #tpu.memory_space<vmem>>, vector<2x7x1xf32>
    tpu.vector_store %arg5[%c0_14, %c0_15, %c0_16], %4 {strides = array<i32>} : memref<2x7x1xf32, #tpu.memory_space<vmem>>, vector<2x7x1xf32>,
    %c0_17 = arith.constant 0 : index
    %c0_18 = arith.constant 0 : index
    %c0_19 = arith.constant 0 : index
    %33 = vector.load %arg6[%c0_17, %c0_18, %c0_19] : memref<2x7x1xf32, #tpu.memory_space<vmem>>, vector<2x7x1xf32>
    tpu.vector_store %arg6[%c0_17, %c0_18, %c0_19], %17 {strides = array<i32>} : memref<2x7x1xf32, #tpu.memory_space<vmem>>, vector<2x7x1xf32>,
    return
  }
  func.func @transform_0(%arg0: i32) -> (i32, i32, i32) {
    %c0_i32 = arith.constant 0 : i32
    %c0_i32_0 = arith.constant 0 : i32
    %c0_i32_1 = arith.constant 0 : i32
    return %arg0, %c0_i32, %c0_i32_0 : i32, i32, i32
  }
  func.func @transform_1(%arg0: i32) -> (i32, i32) {
    %c0_i32 = arith.constant 0 : i32
    %c0_i32_0 = arith.constant 0 : i32
    %c0_i32_1 = arith.constant 0 : i32
    return %c0_i32, %c0_i32_0 : i32, i32
  }
  func.func @transform_2(%arg0: i32) -> (i32, i32) {
    %c0_i32 = arith.constant 0 : i32
    %c0_i32_0 = arith.constant 0 : i32
    %c0_i32_1 = arith.constant 0 : i32
    return %c0_i32, %c0_i32_0 : i32, i32
  }
  func.func @transform_3(%arg0: i32) -> (i32, i32, i32) {
    %c0_i32 = arith.constant 0 : i32
    %c0_i32_0 = arith.constant 0 : i32
    %c0_i32_1 = arith.constant 0 : i32
    return %arg0, %c0_i32, %c0_i32_0 : i32, i32, i32
  }
  func.func @transform_4(%arg0: i32) -> (i32, i32, i32) {
    %c0_i32 = arith.constant 0 : i32
    %c0_i32_0 = arith.constant 0 : i32
    %c0_i32_1 = arith.constant 0 : i32
    return %arg0, %c0_i32, %c0_i32_0 : i32, i32, i32
  }
  func.func @transform_5(%arg0: i32) -> (i32, i32, i32) {
    %c0_i32 = arith.constant 0 : i32
    %c0_i32_0 = arith.constant 0 : i32
    %c0_i32_1 = arith.constant 0 : i32
    return %arg0, %c0_i32, %c0_i32_0 : i32, i32, i32
  }
}

</mosaic_0001>

<llo_original>
// kernel: tpu_custom_call.1
$region0: #{tpu_custom_call.1}
  #allocation0 [shape = 'u32[]', space=smem, size = 0x4, offset = 0x4, fixed_abs, tag = 'smem constant byte address 0x4 - core index']
  #allocation1 [shape = 'u32[144,128]{1,0:T(1,128)}', space=vmem, size = 0x12000, scoped, tag = 'internal scratch']
  %s0 = inlined_call_operand.vmem [shape: f32[4,7,96], index: 0, kind: input, shape index: {}]
  %s1 = inlined_call_operand.vmem [shape: f32[7,1], index: 1, kind: input, shape index: {}]
  %s2 = inlined_call_operand.vmem [shape: f32[7,1], index: 2, kind: input, shape index: {}]
  %s3 = inlined_call_operand.vmem [shape: f32[4,7,96], index: 3, kind: output, shape index: {0}]
  %s4 = inlined_call_operand.vmem [shape: f32[4,7,1], index: 4, kind: output, shape index: {1}]
  %s5 = inlined_call_operand.vmem [shape: f32[4,7,1], index: 5, kind: output, shape index: {2}]
  %6 = xla_tuple %s3, %s4, %s5
  %s7 = sld [smem:[#allocation0]]
  $region61: #{tpu_custom_call.1} parent=0
    _
  %s9 = ssub.s32 1, %s7
  %s10 = scalar_select 0, %s9, %s7
  loop: start=0, step=1, limit=4
  $region2: #{tpu_custom_call.1} parent=0 // loop_pre_header
    _
  $region3: #{tpu_custom_call.1} parent=0 // loop_header
    %s12 = sphi 0, %s16
    %p13 = scmp.ge.s32.totalorder %s12, 4
    %s22 = sphi 0, %s24
    %s25 = sphi 0, %s22
    %s26 = sphi 0, %s25
    %s42 = sphi 0, %s26
    %s46 = sphi 0, %s46
    %s48 = sphi 0, %s46
    %s49 = sphi 0, %s48
    %s63 = sphi 0, %s49
    %s67 = sphi 0, %s67
    %s69 = sphi 0, %s67
    %s70 = sphi 0, %s69
    %s84 = sphi 0, %s70
    %s90 = sphi 0, %s92
    %s93 = sphi 0, %s90
    %s94 = sphi 0, %s93
    %s110 = sphi 0, %s94
    %s116 = sphi 0, %s118
    %s119 = sphi 0, %s116
    %s120 = sphi 0, %s119
    %s136 = sphi 0, %s120
    %s142 = sphi 0, %s144
    %s145 = sphi 0, %s142
    %s146 = sphi 0, %s145
    %s162 = sphi 0, %s146
  $region4: #{tpu_custom_call.1} parent=0 // loop_header_branch
    %15 = sbr.rel (%p13) target = $region8
  $region5: #{tpu_custom_call.1} parent=0 // loop_body
    %s17 = ssub.s32 %s12, 1
    %s18 = ssub.s32 %s12, 2
    %s19 = sadd.s32 %s12, 1
    %s20 = ssub.s32 %s12, %s19
    %p21 = scmp.eq.s32.totalorder %s20, 0
    %s23 = sadd.s32 %s22, 1
    %s24 = scalar_select %p21, %s22, %s23
    %p27 = pneg %p21
    %p28 = scmp.eq.s32.totalorder %s12, 1
    %p29 = por %p27, %p28
    %p30 = scmp.ne.s32.totalorder %s22, %s25
    %p31 = scmp.eq.s32.totalorder %s12, 0
    %p32 = por %p30, %p31
    %p33 = scmp.ne.s32.totalorder %s22, %s25
    %p34 = scmp.eq.s32.totalorder %s17, 1
    %p35 = por %p33, %p34
    %p36 = scmp.ne.s32.totalorder %s25, %s26
    %p37 = scmp.eq.s32.totalorder %s17, 0
    %p38 = por %p36, %p37
    %p39 = scmp.ne.s32.totalorder %s25, %s26
    %p40 = scmp.eq.s32.totalorder %s18, 1
    %p41 = por %p39, %p40
    %p43 = scmp.ne.s32.totalorder %s26, %s42
    %p44 = scmp.eq.s32.totalorder %s18, 0
    %p45 = por %p43, %p44
    %s47 = sadd.s32 %s46, 1
    %p50 = scmp.eq.s32.totalorder %s12, 1
    %p51 = scmp.ne.s32.totalorder %s46, %s48
    %p52 = scmp.eq.s32.totalorder %s12, 0
    %p53 = por %p51, %p52
    %p54 = scmp.ne.s32.totalorder %s46, %s48
    %p55 = scmp.eq.s32.totalorder %s17, 1
    %p56 = por %p54, %p55
    %p57 = scmp.ne.s32.totalorder %s48, %s49
    %p58 = scmp.eq.s32.totalorder %s17, 0
    %p59 = por %p57, %p58
    %p60 = scmp.ne.s32.totalorder %s48, %s49
    %p61 = scmp.eq.s32.totalorder %s18, 1
    %p62 = por %p60, %p61
    %p64 = scmp.ne.s32.totalorder %s49, %s63
    %p65 = scmp.eq.s32.totalorder %s18, 0
    %p66 = por %p64, %p65
    %s68 = sadd.s32 %s67, 1
    %p71 = scmp.eq.s32.totalorder %s12, 1
    %p72 = scmp.ne.s32.totalorder %s67, %s69
    %p73 = scmp.eq.s32.totalorder %s12, 0
    %p74 = por %p72, %p73
    %p75 = scmp.ne.s32.totalorder %s67, %s69
    %p76 = scmp.eq.s32.totalorder %s17, 1
    %p77 = por %p75, %p76
    %p78 = scmp.ne.s32.totalorder %s69, %s70
    %p79 = scmp.eq.s32.totalorder %s17, 0
    %p80 = por %p78, %p79
    %p81 = scmp.ne.s32.totalorder %s69, %s70
    %p82 = scmp.eq.s32.totalorder %s18, 1
    %p83 = por %p81, %p82
    %p85 = scmp.ne.s32.totalorder %s70, %s84
    %p86 = scmp.eq.s32.totalorder %s18, 0
    %p87 = por %p85, %p86
    %s88 = ssub.s32 %s12, %s19
    %p89 = scmp.eq.s32.totalorder %s88, 0
    %s91 = sadd.s32 %s90, 1
    %s92 = scalar_select %p89, %s90, %s91
    %p95 = pneg %p89
    %p96 = scmp.eq.s32.totalorder %s12, 1
    %p97 = por %p95, %p96
    %p98 = scmp.ne.s32.totalorder %s90, %s93
    %p99 = scmp.eq.s32.totalorder %s12, 0
    %p100 = por %p98, %p99
    %p101 = scmp.ne.s32.totalorder %s90, %s93
    %p102 = scmp.eq.s32.totalorder %s17, 1
    %p103 = por %p101, %p102
    %p104 = scmp.ne.s32.totalorder %s93, %s94
    %p105 = scmp.eq.s32.totalorder %s17, 0
    %p106 = por %p104, %p105
    %p107 = scmp.ne.s32.totalorder %s93, %s94
    %p108 = scmp.eq.s32.totalorder %s18, 1
    %p109 = por %p107, %p108
    %p111 = scmp.ne.s32.totalorder %s94, %s110
    %p112 = scmp.eq.s32.totalorder %s18, 0
    %p113 = por %p111, %p112
    %s114 = ssub.s32 %s12, %s19
    %p115 = scmp.eq.s32.totalorder %s114, 0
    %s117 = sadd.s32 %s116, 1
    %s118 = scalar_select %p115, %s116, %s117
    %p121 = pneg %p115
    %p122 = scmp.eq.s32.totalorder %s12, 1
    %p123 = por %p121, %p122
    %p124 = scmp.ne.s32.totalorder %s116, %s119
    %p125 = scmp.eq.s32.totalorder %s12, 0
    %p126 = por %p124, %p125
    %p127 = scmp.ne.s32.totalorder %s116, %s119
    %p128 = scmp.eq.s32.totalorder %s17, 1
    %p129 = por %p127, %p128
    %p130 = scmp.ne.s32.totalorder %s119, %s120
    %p131 = scmp.eq.s32.totalorder %s17, 0
    %p132 = por %p130, %p131
    %p133 = scmp.ne.s32.totalorder %s119, %s120
    %p134 = scmp.eq.s32.totalorder %s18, 1
    %p135 = por %p133, %p134
    %p137 = scmp.ne.s32.totalorder %s120, %s136
    %p138 = scmp.eq.s32.totalorder %s18, 0
    %p139 = por %p137, %p138
    %s140 = ssub.s32 %s12, %s19
    %p141 = scmp.eq.s32.totalorder %s140, 0
    %s143 = sadd.s32 %s142, 1
    %s144 = scalar_select %p141, %s142, %s143
    %p147 = pneg %p141
    %p148 = scmp.eq.s32.totalorder %s12, 1
    %p149 = por %p147, %p148
    %p150 = scmp.ne.s32.totalorder %s142, %s145
    %p151 = scmp.eq.s32.totalorder %s12, 0
    %p152 = por %p150, %p151
    %p153 = scmp.ne.s32.totalorder %s142, %s145
    %p154 = scmp.eq.s32.totalorder %s17, 1
    %p155 = por %p153, %p154
    %p156 = scmp.ne.s32.totalorder %s145, %s146
    %p157 = scmp.eq.s32.totalorder %s17, 0
    %p158 = por %p156, %p157
    %p159 = scmp.ne.s32.totalorder %s145, %s146
    %p160 = scmp.eq.s32.totalorder %s18, 1
    %p161 = por %p159, %p160
    %p163 = scmp.ne.s32.totalorder %s146, %s162
    %p164 = scmp.eq.s32.totalorder %s18, 0
    %p165 = por %p163, %p164
    %p166 = scmp.le.s32.totalorder 1, %s12
    %p167 = scmp.lt.s32.totalorder %s12, 3
    %p168 = pnand %p166, %p167
    %p169 = pneg %p168
    // Predicated region
    $region9: #{tpu_custom_call.1} parent=5 // pred_check
      _
    $region10: #{tpu_custom_call.1} parent=5 // pred_check_branch
      %171 = sbr.rel (%p168) target = $region12
    $region11: #{tpu_custom_call.1} parent=5 // pred_region
      %s172 = ssub.s32 %s12, 1
      // Predicated region
      $region13: #{tpu_custom_call.1} parent=11 // pred_check
        %p173 = pneg %p59
      $region14: #{tpu_custom_call.1} parent=11 // pred_check_branch
        %175 = sbr.rel (%p173) target = $region16
      $region15: #{tpu_custom_call.1} parent=11 // pred_region
        _
      $region16: #{tpu_custom_call.1} parent=11 // pred_fallthru
        _
      // Predicated region
      $region17: #{tpu_custom_call.1} parent=11 // pred_check
        %p176 = pneg %p80
      $region18: #{tpu_custom_call.1} parent=11 // pred_check_branch
        %178 = sbr.rel (%p176) target = $region20
      $region19: #{tpu_custom_call.1} parent=11 // pred_region
        _
      $region20: #{tpu_custom_call.1} parent=11 // pred_fallthru
        _
    $region12: #{tpu_custom_call.1} parent=5 // pred_fallthru
      _
    %p179 = scmp.lt.s32.totalorder %s12, 2
    // Predicated region
    $region21: #{tpu_custom_call.1} parent=5 // pred_check
      %p180 = pneg %p179
    $region22: #{tpu_custom_call.1} parent=5 // pred_check_branch
      %182 = sbr.rel (%p180) target = $region24
    $region23: #{tpu_custom_call.1} parent=5 // pred_region
      // Predicated region
      $region25: #{tpu_custom_call.1} parent=23 // pred_check
        %p183 = pneg %p32
      $region26: #{tpu_custom_call.1} parent=23 // pred_check_branch
        %185 = sbr.rel (%p183) target = $region28
      $region27: #{tpu_custom_call.1} parent=23 // pred_region
        %s186 = smul.u32 2, %s12
        %p187 = scmp.lt.s32.totalorder %s186, 3
        %s188 = scalar_select %p187, %s186, 3
        %s189 = smul.addr %s188, 8
        %s190 = scalar_lea.vmem %s0, %s189
        %s191 = smul.u32 2, %s12
      $region28: #{tpu_custom_call.1} parent=23 // pred_fallthru
        _
    $region24: #{tpu_custom_call.1} parent=5 // pred_fallthru
      _
    %p192 = scmp.le.s32.totalorder 1, %s12
    %p193 = scmp.lt.s32.totalorder %s12, 3
    %p194 = pnand %p192, %p193
    %p195 = pneg %p194
    // Predicated region
    $region29: #{tpu_custom_call.1} parent=5 // pred_check
      _
    $region30: #{tpu_custom_call.1} parent=5 // pred_check_branch
      %197 = sbr.rel (%p194) target = $region32
    $region31: #{tpu_custom_call.1} parent=5 // pred_region
      %s198 = ssub.s32 %s12, 1
      %s199 = smul.u32 2, %s17
      %p200 = scmp.lt.s32.totalorder %s199, 3
      %s201 = scalar_select %p200, %s199, 3
      %s202 = smul.addr %s201, 8
      %s203 = scalar_lea.vmem %s0, %s202
      %p204 = pneg %p38
      %p205 = pneg %p35
      %p206 = pneg %p59
      %p207 = pneg %p56
      %p208 = pneg %p80
      %p209 = pneg %p77
      %p210 = pneg %p106
      %p211 = pneg %p103
      %s212 = smul.u32 2, %s17
      %p213 = scmp.lt.s32.totalorder %s212, 3
      %s214 = scalar_select %p213, %s212, 3
      %s215 = smul.addr %s214, 8
      %s216 = scalar_lea.vmem %s3, %s215
      %p217 = pneg %p132
      %p218 = pneg %p129
      %s219 = smul.u32 2, %s17
      %p220 = scmp.lt.s32.totalorder %s219, 3
      %s221 = scalar_select %p220, %s219, 3
      %s222 = smul.addr %s221, 8
      %s223 = scalar_lea.vmem %s4, %s222
      %p224 = pneg %p158
      %p225 = pneg %p155
      %s226 = smul.u32 2, %s17
      %p227 = scmp.lt.s32.totalorder %s226, 3
      %s228 = scalar_select %p227, %s226, 3
      %s229 = smul.addr %s228, 8
      %s230 = scalar_lea.vmem %s5, %s229
      %s231 = smul.u32 2, %s17
      %p232 = scmp.lt.s32.totalorder %s231, 3
      %s233 = scalar_select %p232, %s231, 3
      %s234 = smul.addr %s233, 8
      %s235 = scalar_lea.vmem %s0, %s234
      %s236 = smul.u32 2, %s17
      %s237 = smul.u32 2, %s17
      %p238 = scmp.lt.s32.totalorder %s237, 3
      %s239 = scalar_select %p238, %s237, 3
      %s240 = smul.addr %s239, 8
      %s241 = scalar_lea.vmem %s3, %s240
      %s242 = smul.u32 2, %s17
      %s243 = smul.u32 2, %s17
      %p244 = scmp.lt.s32.totalorder %s243, 3
      %s245 = scalar_select %p244, %s243, 3
      %s246 = smul.addr %s245, 8
      %s247 = scalar_lea.vmem %s4, %s246
      %s248 = smul.u32 2, %s17
      %s249 = smul.u32 2, %s17
      %p250 = scmp.lt.s32.totalorder %s249, 3
      %s251 = scalar_select %p250, %s249, 3
      %s252 = smul.addr %s251, 8
      %s253 = scalar_lea.vmem %s5, %s252
      %s254 = smul.u32 2, %s17
      %v255 = vld [vmem:[%s235] sm:$0x7f]
      %v256 = vld [vmem:[%s235 + $0x8] sm:$0x7f]
      %vm257 = vcmask 784384
      %v258 = vsel %vm257, %v255, 0.0
      %259 = vadd.xlane.f32.xlu0 %v258
      %v260 = vpop.xlane.xlu0 %259
      %v261 = vsel %vm257, %v256, 0.0
      %262 = vadd.xlane.f32.xlu0 %v261
      %v263 = vpop.xlane.xlu0 %262
      %v264 = vrcp.pop 96.0
      %v265 = vmul.f32 %v260, %v264
      %v266 = vmul.f32 %v263, %v264
      %v267 = vsub.f32 %v255, %v265
      %v268 = vsub.f32 %v256, %v266
      %v269 = vmul.f32 %v267, %v267
      %v270 = vmul.f32 %v268, %v268
      %v271 = vsel %vm257, %v269, 0.0
      %272 = vadd.xlane.f32.xlu0 %v271
      %v273 = vpop.xlane.xlu0 %272
      %v274 = vsel %vm257, %v270, 0.0
      %275 = vadd.xlane.f32.xlu0 %v274
      %v276 = vpop.xlane.xlu0 %275
      %v277 = vmul.f32 %v273, %v264
      %v278 = vmul.f32 %v276, %v264
      %v279 = vadd.f32 %v277, 1e-05
      %v280 = vadd.f32 %v278, 1e-05
      %v281 = vrsqrt.pop %v279
      %v282 = vrsqrt.pop %v280
      %v283 = vrsqrt.pop %v279
      %v284 = vmul.f32 %v279, %v283
      %vm285 = vcmp.eq.f32.partialorder %v279, inf
      %v286 = vsel %vm285, %v279, %v284
      %vm287 = vcmp.eq.f32.partialorder %v279, 0.0
      %v288 = vand.u32 %v279, 2147483648
      %v289 = vsel %vm287, %v288, %v286
      %v290 = vrsqrt.pop %v280
      %v291 = vmul.f32 %v280, %v290
      %vm292 = vcmp.eq.f32.partialorder %v280, inf
      %v293 = vsel %vm292, %v280, %v291
      %vm294 = vcmp.eq.f32.partialorder %v280, 0.0
      %v295 = vand.u32 %v280, 2147483648
      %v296 = vsel %vm294, %v295, %v293
      %v297 = vld [vmem:[%s1] sm:$0x7f]
      %v298 = vld [vmem:[%s2] sm:$0x7f]
      %v299 = vmul.f32 %v281, %v297
      %v300 = vmul.f32 %v282, %v297
      %v301 = vmul.f32 %v265, %v299
      %v302 = vmul.f32 %v266, %v300
      %v303 = vsub.f32 %v298, %v301
      %v304 = vsub.f32 %v298, %v302
      %306 = vset.pattern.permute.xlu0 0
      %307 = vperm.xlu0 %306, %v299
      %v308 = vpop.permute.xlu0 %307
      %311 = vset.pattern.permute.xlu0 0
      %312 = vperm.xlu0 %311, %v300
      %v313 = vpop.permute.xlu0 %312
      %v315 = vmul.f32 %v255, %v308
      %v316 = vmul.f32 %v256, %v313
      %318 = vset.pattern.permute.xlu0 0
      %319 = vperm.xlu0 %318, %v303
      %v320 = vpop.permute.xlu0 %319
      %323 = vset.pattern.permute.xlu0 0
      %324 = vperm.xlu0 %323, %v304
      %v325 = vpop.permute.xlu0 %324
      %v327 = vadd.f32 %v315, %v320
      %v328 = vadd.f32 %v316, %v325
      %329 = vst.msk [vmem:[%s241] sm:$0x7f] %vm257, %v327
      %330 = vst.msk [vmem:[%s241 + $0x8] sm:$0x7f] %vm257, %v328
      %vm331 = vcmask 6144
      %332 = vst.msk [vmem:[%s247] sm:$0x7f] %vm331, %v265
      %333 = vst.msk [vmem:[%s247 + $0x8] sm:$0x7f] %vm331, %v266
      %334 = vst.msk [vmem:[%s253] sm:$0x7f] %vm331, %v289
      %335 = vst.msk [vmem:[%s253 + $0x8] sm:$0x7f] %vm331, %v296
      %s336 = smul.u32 2, %s17
      %p337 = scmp.lt.s32.totalorder %s336, 3
      %s338 = scalar_select %p337, %s336, 3
      %s339 = smul.addr %s338, 8
      %s340 = scalar_lea.vmem %s3, %s339
      %s341 = smul.u32 2, %s17
      %p342 = scmp.lt.s32.totalorder %s341, 3
      %s343 = scalar_select %p342, %s341, 3
      %s344 = smul.addr %s343, 8
      %s345 = scalar_lea.vmem %s4, %s344
      %s346 = smul.u32 2, %s17
      %p347 = scmp.lt.s32.totalorder %s346, 3
      %s348 = scalar_select %p347, %s346, 3
      %s349 = smul.addr %s348, 8
      %s350 = scalar_lea.vmem %s5, %s349
      // Predicated region
      $region33: #{tpu_custom_call.1} parent=31 // pred_check
        %p351 = pneg %p103
      $region34: #{tpu_custom_call.1} parent=31 // pred_check_branch
        %353 = sbr.rel (%p351) target = $region36
      $region35: #{tpu_custom_call.1} parent=31 // pred_region
        %s354 = smul.u32 2, %s17
      $region36: #{tpu_custom_call.1} parent=31 // pred_fallthru
        _
      // Predicated region
      $region37: #{tpu_custom_call.1} parent=31 // pred_check
        %p355 = pneg %p129
      $region38: #{tpu_custom_call.1} parent=31 // pred_check_branch
        %357 = sbr.rel (%p355) target = $region40
      $region39: #{tpu_custom_call.1} parent=31 // pred_region
        %s358 = smul.u32 2, %s17
      $region40: #{tpu_custom_call.1} parent=31 // pred_fallthru
        _
      // Predicated region
      $region41: #{tpu_custom_call.1} parent=31 // pred_check
        %p359 = pneg %p155
      $region42: #{tpu_custom_call.1} parent=31 // pred_check_branch
        %361 = sbr.rel (%p359) target = $region44
      $region43: #{tpu_custom_call.1} parent=31 // pred_region
        %s362 = smul.u32 2, %s17
      $region44: #{tpu_custom_call.1} parent=31 // pred_fallthru
        _
    $region32: #{tpu_custom_call.1} parent=5 // pred_fallthru
      _
    %p363 = scmp.le.s32.totalorder 2, %s12
    // Predicated region
    $region45: #{tpu_custom_call.1} parent=5 // pred_check
      %p364 = pneg %p363
    $region46: #{tpu_custom_call.1} parent=5 // pred_check_branch
      %366 = sbr.rel (%p364) target = $region48
    $region47: #{tpu_custom_call.1} parent=5 // pred_region
      %s367 = ssub.s32 %s12, 2
      // Predicated region
      $region49: #{tpu_custom_call.1} parent=47 // pred_check
        %p368 = pneg %p109
      $region50: #{tpu_custom_call.1} parent=47 // pred_check_branch
        %370 = sbr.rel (%p368) target = $region52
      $region51: #{tpu_custom_call.1} parent=47 // pred_region
        %s371 = smul.u32 2, %s18
        %p372 = scmp.lt.s32.totalorder %s371, 3
        %s373 = scalar_select %p372, %s371, 3
        %s374 = smul.addr %s373, 8
        %s375 = scalar_lea.vmem %s3, %s374
      $region52: #{tpu_custom_call.1} parent=47 // pred_fallthru
        _
      // Predicated region
      $region53: #{tpu_custom_call.1} parent=47 // pred_check
        %p376 = pneg %p135
      $region54: #{tpu_custom_call.1} parent=47 // pred_check_branch
        %378 = sbr.rel (%p376) target = $region56
      $region55: #{tpu_custom_call.1} parent=47 // pred_region
        %s379 = smul.u32 2, %s18
        %p380 = scmp.lt.s32.totalorder %s379, 3
        %s381 = scalar_select %p380, %s379, 3
        %s382 = smul.addr %s381, 8
        %s383 = scalar_lea.vmem %s4, %s382
      $region56: #{tpu_custom_call.1} parent=47 // pred_fallthru
        _
      // Predicated region
      $region57: #{tpu_custom_call.1} parent=47 // pred_check
        %p384 = pneg %p161
      $region58: #{tpu_custom_call.1} parent=47 // pred_check_branch
        %386 = sbr.rel (%p384) target = $region60
      $region59: #{tpu_custom_call.1} parent=47 // pred_region
        %s387 = smul.u32 2, %s18
        %p388 = scmp.lt.s32.totalorder %s387, 3
        %s389 = scalar_select %p388, %s387, 3
        %s390 = smul.addr %s389, 8
        %s391 = scalar_lea.vmem %s5, %s390
      $region60: #{tpu_custom_call.1} parent=47 // pred_fallthru
        _
    $region48: #{tpu_custom_call.1} parent=5 // pred_fallthru
      _
  $region6: #{tpu_custom_call.1} parent=0 // loop_footer
    %s16 = sadd.s32 1, %s12
  $region7: #{tpu_custom_call.1} parent=0 // loop_footer_branch
    %11 = sbr.rel target = $region3
  $region8: #{tpu_custom_call.1} parent=0 // loop_exit
    _

</llo_original>
